<compile_context>
chip_gen: v5e
topology: v5e:2x2
jax: 0.10.0
libtpu: 0.0.40
codegen_flags: <defaults>
</compile_context>

<pallas_src>
import functools

import jax
import jax.numpy as jnp
from jax import lax
from jax.experimental import pallas as pl
from jax.experimental.pallas import tpu as pltpu

DATA_DIM = 32
N_NEURONS = (64, 32)
LANE = 128  # vreg lane width


def _round_up(n, m):
    return ((n + m - 1) // m) * m


def _cdiv(a, b):
    return (a + b - 1) // b


def _mlp_kernel(x_ref, w1_ref, b1_ref, w2_ref, b2_ref, w3_ref, b3_ref, o_ref,
                *, n_chunks, chunk, compute_dtype):
    # x:  [tile_b, data_dim] (natural HBM layout; every compute intermediate
    #                         keeps the batch on the 128-lane axis)
    # w1: [d1, data_dim], b1: [d1, 1]; w2: [d2, d1], b2: [d2, 1]
    # w3: [d2, 1] head-weight column; b3: [1, 1]
    w1 = w1_ref[...]
    b1 = b1_ref[...]
    w2 = w2_ref[...]
    b2 = b2_ref[...]
    w3 = w3_ref[...]
    b3 = b3_ref[...]

    def body(c, carry):
        start = pl.multiple_of(c * chunk, chunk)
        # Optional bf16 cast happens here on the VPU (hidden under DMA/MXU),
        # never as a separate HBM pass in the wrapper.
        xc = x_ref[pl.ds(start, chunk), :].astype(compute_dtype)   # [chunk, d0]
        # Layer 1: contract the feature axis of both operands so the result
        # keeps the batch on lanes: [d1, d0] x [chunk, d0] -> [d1, chunk].
        # Dropout(0.1) after the ReLU is identity at inference.
        h1 = lax.dot_general(w1, xc, (((1,), (1,)), ((), ())),
                             preferred_element_type=jnp.float32)
        h1 = jnp.maximum(h1 + b1, 0.0)                             # [d1, chunk] f32
        # Layer 2: standard-form MXU matmul, f32 accumulation.
        h2 = jnp.dot(w2, h1.astype(compute_dtype),
                     preferred_element_type=jnp.float32)
        h2 = jnp.maximum(h2 + b2, 0.0)                             # [d2, chunk] f32
        # Output head (out_features=1): VPU multiply + sublane (XLU) reduce ->
        # lane-dense [1, chunk]; keeps a wasted 1-column MXU push/pop off the
        # critical path and avoids a masked 1-lane store.
        out = jnp.sum(h2 * w3, axis=0, keepdims=True) + b3
        o_ref[:, pl.ds(start, chunk)] = out.astype(o_ref.dtype)
        return carry

    lax.fori_loop(0, n_chunks, body, 0, unroll=True)


@functools.partial(jax.jit, static_argnames=("tile_b", "use_bf16"))
def mlp_forward(x, params, *, tile_b=2048, use_bf16=False):
    """x: [batch, data_dim] -> [batch, 1] (eval-mode forward of the MLP)."""
    w1, b1, w2, b2, w3, b3 = params
    batch, data_dim = x.shape
    d1 = w1.shape[0]
    d2 = w2.shape[0]
    out_dtype = x.dtype

    # ---- lane-aligned batch tiling ------------------------------------------
    tile_b = max(LANE, _round_up(tile_b, LANE))
    tb = min(tile_b, _round_up(batch, LANE))
    # v7x megacore: give batches >= 256 at least 2 grid steps so the "parallel"
    # axis shards across both TensorCores (no effect on v5e/v6e, 1 TC/chip).
    if batch >= 2 * LANE and _cdiv(batch, tb) < 2:
        tb = _round_up(_cdiv(batch, 2), LANE)
    n_steps = _cdiv(batch, tb)
    padded = n_steps * tb

    # Tiny batches only: pad x up to one lane tile so no block exceeds the
    # array.  Large batches keep ragged final blocks (Pallas clamps the edge
    # DMA) -- no extra HBM pass over x -- and the padded output lanes are
    # sliced off below.
    if batch < tb:
        x = jnp.pad(x, ((0, tb - batch), (0, 0)))

    if use_bf16:
        # Cast only the tiny grid-resident weights here; the x tile is cast
        # inside the kernel.  Accumulation stays f32.
        compute_dtype = jnp.bfloat16
        w1m = w1.astype(compute_dtype)
        w2m = w2.astype(compute_dtype)
    else:
        compute_dtype = jnp.float32
        w1m, w2m = w1, w2

    # In-kernel sub-chunking over the lane axis bounds vreg live ranges at
    # large tiles (h1 [d1, 512] f32 ~= 32 vregs).
    if tb % 512 == 0:
        chunk = 512
    elif tb % 256 == 0:
        chunk = 256
    else:
        chunk = LANE
    n_chunks = tb // chunk

    kernel = functools.partial(_mlp_kernel, n_chunks=n_chunks, chunk=chunk,
                               compute_dtype=compute_dtype)

    def rep(shape):  # weights/biases: resident across the whole grid
        return pl.BlockSpec(shape, lambda i: (0, 0))

    # Raise the scoped-VMEM limit only if a huge tile would approach v5e's
    # 16 MiB scoped default (double-buffered x tile + output + weights + live
    # intermediates); default tile sizes stay far below it.
    vmem_bytes = (2 * tb * data_dim * 4            # double-buffered x tile
                  + 2 * tb * 4                     # double-buffered output slab
                  + 2 * 4 * (d1 * data_dim + d1 + d2 * d1 + d2 + d2 + 1)
                  + 4 * chunk * (data_dim + d1 + d2))
    cp_kwargs = dict(dimension_semantics=("parallel",))
    if vmem_bytes > 12 * 1024 * 1024:
        cp_kwargs["vmem_limit_bytes"] = min(2 * vmem_bytes, 48 * 1024 * 1024)

    outT = pl.pallas_call(
        kernel,
        out_shape=jax.ShapeDtypeStruct((1, padded), out_dtype),
        grid_spec=pltpu.PrefetchScalarGridSpec(
            num_scalar_prefetch=0,
            grid=(n_steps,),
            in_specs=[
                pl.BlockSpec((tb, data_dim), lambda i: (i, 0)),  # x, natural layout
                rep((d1, data_dim)),
                rep((d1, 1)),
                rep((d2, d1)),
                rep((d2, 1)),
                rep((d2, 1)),
                rep((1, 1)),
            ],
            out_specs=pl.BlockSpec((1, tb), lambda i: (0, i)),
        ),
        compiler_params=pltpu.CompilerParams(**cp_kwargs),
    )(x, w1m, b1, w2m, b2, w3, b3)

    # Drop batch padding and return [batch, 1] like the PyTorch module.
    return outT[:, :batch].T


def init_params(key, data_dim, n_neurons):
    """Deterministic init mimicking nn.Linear's U(-1/sqrt(fan_in), 1/sqrt(fan_in)).

    Weights use PyTorch's [out, in] layout (consumed directly by the kernel);
    biases are [out, 1] columns; the head weight is stored as a [d2, 1] column.
    """
    dims = [data_dim, n_neurons[0], n_neurons[1], 1]
    params = []
    for i in range(3):
        fan_in, fan_out = dims[i], dims[i + 1]
        key, kw, kb = jax.random.split(key, 3)
        bound = 1.0 / jnp.sqrt(float(fan_in))
        w = jax.random.uniform(kw, (fan_out, fan_in), jnp.float32, -bound, bound)
        b = jax.random.uniform(kb, (fan_out, 1), jnp.float32, -bound, bound)
        if i == 2:
            w = w.T  # head weight as a [d2, 1] column for the VPU reduce
        params += [w, b]
    return tuple(params)


def mlp_reference(x, params):
    w1, b1, w2, b2, w3, b3 = params
    h = jnp.maximum(x @ w1.T + b1.T, 0.0)
    h = jnp.maximum(h @ w2.T + b2.T, 0.0)
    return h @ w3 + b3


if __name__ == "__main__":
    key = jax.random.PRNGKey(0)
    k_x1, k_x2, k_p = jax.random.split(key, 3)
    params = init_params(k_p, DATA_DIM, N_NEURONS)

    # Case 1: tiny batch -> single grid step, lane-dense output.
    x1 = jax.random.normal(k_x1, (16, DATA_DIM), jnp.float32)
    y1 = mlp_forward(x1, params)
    jax.block_until_ready(y1)
    ref1 = mlp_reference(x1, params)
    assert y1.shape == (16, 1)
    assert jnp.allclose(y1, ref1, atol=1e-5, rtol=1e-5)

    # Case 2: ragged batch, default tile -> forced 2 grid steps (v7x megacore
    # path) with a ragged final input block.
    x2 = jax.random.normal(k_x2, (300, DATA_DIM), jnp.float32)
    ref2 = mlp_reference(x2, params)
    y2 = mlp_forward(x2, params)
    jax.block_until_ready(y2)
    assert y2.shape == (300, 1)
    assert jnp.allclose(y2, ref2, atol=1e-5, rtol=1e-5)

    # Case 3: small explicit tile -> multi-step grid (3 steps) + ragged edge.
    y3 = mlp_forward(x2, params, tile_b=128)
    jax.block_until_ready(y3)
    assert y3.shape == (300, 1)
    assert jnp.allclose(y3, ref2, atol=1e-5, rtol=1e-5)

    # Case 4: bf16 MXU operands (f32 accumulation) -- relaxed tolerance.
    y4 = mlp_forward(x2, params, use_bf16=True)
    jax.block_until_ready(y4)
    assert y4.shape == (300, 1)
    assert jnp.allclose(y4, ref2, atol=5e-2, rtol=5e-2)

    print("KERNEL_OK")
</pallas_src>

<mosaic_0001>
module attributes {stable_mosaic.version = 11 : i64} {
  func.func @_mlp_kernel(%arg0: i32, %arg1: memref<128x32xf32, #tpu.memory_space<vmem>>, %arg2: memref<64x32xf32, #tpu.memory_space<vmem>>, %arg3: memref<64x1xf32, #tpu.memory_space<vmem>>, %arg4: memref<32x64xf32, #tpu.memory_space<vmem>>, %arg5: memref<32x1xf32, #tpu.memory_space<vmem>>, %arg6: memref<32x1xf32, #tpu.memory_space<vmem>>, %arg7: memref<1x1xf32, #tpu.memory_space<vmem>>, %arg8: memref<1x128xf32, #tpu.memory_space<vmem>>) attributes {dimension_semantics = [#tpu.dimension_semantics<parallel>], iteration_bounds = array<i64: 1>, scalar_prefetch = 0 : i64, scratch_operands = 0 : i64, tpu.core_type = #tpu.core_type<tc>, window_params = [{transform_indices = @transform_0, window_bounds = array<i64: 128, 32>}, {pipeline_mode = #tpu.pipeline_mode<synchronous>, transform_indices = @transform_1, window_bounds = array<i64: 64, 32>}, {pipeline_mode = #tpu.pipeline_mode<synchronous>, transform_indices = @transform_2, window_bounds = array<i64: 64, 1>}, {pipeline_mode = #tpu.pipeline_mode<synchronous>, transform_indices = @transform_3, window_bounds = array<i64: 32, 64>}, {pipeline_mode = #tpu.pipeline_mode<synchronous>, transform_indices = @transform_4, window_bounds = array<i64: 32, 1>}, {pipeline_mode = #tpu.pipeline_mode<synchronous>, transform_indices = @transform_5, window_bounds = array<i64: 32, 1>}, {pipeline_mode = #tpu.pipeline_mode<synchronous>, transform_indices = @transform_6, window_bounds = array<i64: 1, 1>}, {transform_indices = @transform_7, window_bounds = array<i64: 1, 128>}]} {
    %c0 = arith.constant 0 : index
    %c0_0 = arith.constant 0 : index
    %0 = vector.load %arg2[%c0, %c0_0] : memref<64x32xf32, #tpu.memory_space<vmem>>, vector<64x32xf32>
    %c0_1 = arith.constant 0 : index
    %c0_2 = arith.constant 0 : index
    %1 = vector.load %arg3[%c0_1, %c0_2] : memref<64x1xf32, #tpu.memory_space<vmem>>, vector<64x1xf32>
    %c0_3 = arith.constant 0 : index
    %c0_4 = arith.constant 0 : index
    %2 = vector.load %arg4[%c0_3, %c0_4] : memref<32x64xf32, #tpu.memory_space<vmem>>, vector<32x64xf32>
    %c0_5 = arith.constant 0 : index
    %c0_6 = arith.constant 0 : index
    %3 = vector.load %arg5[%c0_5, %c0_6] : memref<32x1xf32, #tpu.memory_space<vmem>>, vector<32x1xf32>
    %c0_7 = arith.constant 0 : index
    %c0_8 = arith.constant 0 : index
    %4 = vector.load %arg6[%c0_7, %c0_8] : memref<32x1xf32, #tpu.memory_space<vmem>>, vector<32x1xf32>
    %c0_9 = arith.constant 0 : index
    %c0_10 = arith.constant 0 : index
    %5 = vector.load %arg7[%c0_9, %c0_10] : memref<1x1xf32, #tpu.memory_space<vmem>>, vector<1x1xf32>
    %c0_i32 = arith.constant 0 : i32
    %c128_i32 = arith.constant 128 : i32
    %6 = arith.muli %c0_i32, %c128_i32 : i32
    %7 = tpu.assume_multiple %6, 128 : i32
    %8 = arith.index_cast %7 : i32 to index
    %c0_11 = arith.constant 0 : index
    %9 = vector.load %arg1[%8, %c0_11] : memref<128x32xf32, #tpu.memory_space<vmem>>, vector<128x32xf32>
    %cst = arith.constant dense<0.000000e+00> : vector<64x128xf32>
    %10 = tpu.matmul %0, %9, %cst {dimension_numbers = #tpu.dot_dimension_numbers<[1], [1], [0], [0], [0, 0, 1, 0], [], []>} : vector<64x32xf32>, vector<128x32xf32>, vector<64x128xf32> -> vector<64x128xf32>
    %11 = vector.broadcast %1 : vector<64x1xf32> to vector<64x128xf32>
    %12 = arith.addf %10, %11 : vector<64x128xf32>
    %cst_12 = arith.constant 0.000000e+00 : f32
    %13 = vector.broadcast %cst_12 : f32 to vector<64x128xf32>
    %14 = arith.maximumf %12, %13 : vector<64x128xf32>
    %cst_13 = arith.constant dense<0.000000e+00> : vector<32x128xf32>
    %15 = tpu.matmul %2, %14, %cst_13 {dimension_numbers = #tpu.dot_dimension_numbers<[1], [0], [0], [1], [0, 0, 1, 1], [], []>} : vector<32x64xf32>, vector<64x128xf32>, vector<32x128xf32> -> vector<32x128xf32>
    %16 = vector.broadcast %3 : vector<32x1xf32> to vector<32x128xf32>
    %17 = arith.addf %15, %16 : vector<32x128xf32>
    %cst_14 = arith.constant 0.000000e+00 : f32
    %18 = vector.broadcast %cst_14 : f32 to vector<32x128xf32>
    %19 = arith.maximumf %17, %18 : vector<32x128xf32>
    %20 = vector.broadcast %4 : vector<32x1xf32> to vector<32x128xf32>
    %21 = arith.mulf %19, %20 : vector<32x128xf32>
    %cst_15 = arith.constant dense<0.000000e+00> : vector<128xf32>
    %22 = vector.multi_reduction <add>, %21, %cst_15 [0] : vector<32x128xf32> to vector<128xf32>
    %23 = vector.shape_cast %22 : vector<128xf32> to vector<1x128xf32>
    %24 = vector.broadcast %5 : vector<1x1xf32> to vector<1x128xf32>
    %25 = arith.addf %23, %24 : vector<1x128xf32>
    %c0_16 = arith.constant 0 : index
    %26 = arith.index_cast %7 : i32 to index
    %27 = vector.load %arg8[%c0_16, %26] : memref<1x128xf32, #tpu.memory_space<vmem>>, vector<1x128xf32>
    tpu.vector_store %arg8[%c0_16, %26], %25 {strides = array<i32>} : memref<1x128xf32, #tpu.memory_space<vmem>>, vector<1x128xf32>,
    %c1_i32 = arith.constant 1 : i32
    return
  }
  func.func @transform_0(%arg0: i32) -> (i32, i32) {
    %c0_i32 = arith.constant 0 : i32
    %c0_i32_0 = arith.constant 0 : i32
    return %arg0, %c0_i32 : i32, i32
  }
  func.func @transform_1(%arg0: i32) -> (i32, i32) {
    %c0_i32 = arith.constant 0 : i32
    %c0_i32_0 = arith.constant 0 : i32
    %c0_i32_1 = arith.constant 0 : i32
    return %c0_i32, %c0_i32_0 : i32, i32
  }
  func.func @transform_2(%arg0: i32) -> (i32, i32) {
    %c0_i32 = arith.constant 0 : i32
    %c0_i32_0 = arith.constant 0 : i32
    %c0_i32_1 = arith.constant 0 : i32
    return %c0_i32, %c0_i32_0 : i32, i32
  }
  func.func @transform_3(%arg0: i32) -> (i32, i32) {
    %c0_i32 = arith.constant 0 : i32
    %c0_i32_0 = arith.constant 0 : i32
    %c0_i32_1 = arith.constant 0 : i32
    return %c0_i32, %c0_i32_0 : i32, i32
  }
  func.func @transform_4(%arg0: i32) -> (i32, i32) {
    %c0_i32 = arith.constant 0 : i32
    %c0_i32_0 = arith.constant 0 : i32
    %c0_i32_1 = arith.constant 0 : i32
    return %c0_i32, %c0_i32_0 : i32, i32
  }
  func.func @transform_5(%arg0: i32) -> (i32, i32) {
    %c0_i32 = arith.constant 0 : i32
    %c0_i32_0 = arith.constant 0 : i32
    %c0_i32_1 = arith.constant 0 : i32
    return %c0_i32, %c0_i32_0 : i32, i32
  }
  func.func @transform_6(%arg0: i32) -> (i32, i32) {
    %c0_i32 = arith.constant 0 : i32
    %c0_i32_0 = arith.constant 0 : i32
    %c0_i32_1 = arith.constant 0 : i32
    return %c0_i32, %c0_i32_0 : i32, i32
  }
  func.func @transform_7(%arg0: i32) -> (i32, i32) {
    %c0_i32 = arith.constant 0 : i32
    %c0_i32_0 = arith.constant 0 : i32
    return %c0_i32, %arg0 : i32, i32
  }
}

</mosaic_0001>

<llo_original>
// kernel: mlp_forward.1
$region0: #{mlp_forward.1}
  #allocation0 [shape = 'u32[]', space=smem, size = 0x4, offset = 0x4, fixed_abs, tag = 'smem constant byte address 0x4 - core index']
  #allocation1 [shape = 'u32[72,128]{1,0:T(1,128)}', space=vmem, size = 0x9000, scoped, tag = 'internal scratch']
  #allocation2 [shape = 'f32[1,1]{1,0:T(1,128)S(1)}', space=vmem, size = 0x200, scoped, tag = 'scoped memory for mlp_forward.1']
  %s0 = inlined_call_operand.vmem [shape: f32[128,32], index: 0, kind: input, shape index: {}]
  %s1 = inlined_call_operand.vmem [shape: f32[64,32], index: 1, kind: input, shape index: {}]
  %s2 = inlined_call_operand.vmem [shape: f32[64,1], index: 2, kind: input, shape index: {}]
  %s3 = inlined_call_operand.vmem [shape: f32[32,64], index: 3, kind: input, shape index: {}]
  %s4 = inlined_call_operand.vmem [shape: f32[32,1], index: 4, kind: input, shape index: {}]
  %s5 = inlined_call_operand.vmem [shape: f32[32,1], index: 5, kind: input, shape index: {}]
  %s6 = inlined_call_operand.<no memory space> [shape: f32[1,1], index: 6, kind: input, shape index: {}]
  %s7 = inlined_call_operand.vmem [shape: f32[1,128], index: 7, kind: output, shape index: {}]
  %s8 = sld [smem:[#allocation0]]
  $region38: #{mlp_forward.1} parent=0
    _
  %s10 = ssub.s32 1, %s8
  %s11 = scalar_select 0, %s10, %s8
  %v12 = vstv %s6
  %13 = vst [vmem:[#allocation2] sm:$0x1] %v12
  // Predicated region
  $region2: #{mlp_forward.1} parent=0 // pred_check
    _
  $region3: #{mlp_forward.1} parent=0 // pred_check_branch
    %15 = sbr.rel (0) target = $region5
  $region4: #{mlp_forward.1} parent=0 // pred_region
    _
  $region5: #{mlp_forward.1} parent=0 // pred_fallthru
    _
  // Predicated region
  $region6: #{mlp_forward.1} parent=0 // pred_check
    _
  $region7: #{mlp_forward.1} parent=0 // pred_check_branch
    %17 = sbr.rel (0) target = $region9
  $region8: #{mlp_forward.1} parent=0 // pred_region
    _
  $region9: #{mlp_forward.1} parent=0 // pred_fallthru
    _
  // Predicated region
  $region10: #{mlp_forward.1} parent=0 // pred_check
    _
  $region11: #{mlp_forward.1} parent=0 // pred_check_branch
    %19 = sbr.rel (0) target = $region13
  $region12: #{mlp_forward.1} parent=0 // pred_region
    _
  $region13: #{mlp_forward.1} parent=0 // pred_fallthru
    _
  // Predicated region
  $region14: #{mlp_forward.1} parent=0 // pred_check
    _
  $region15: #{mlp_forward.1} parent=0 // pred_check_branch
    %21 = sbr.rel (0) target = $region17
  $region16: #{mlp_forward.1} parent=0 // pred_region
    _
  $region17: #{mlp_forward.1} parent=0 // pred_fallthru
    _
  // Predicated region
  $region18: #{mlp_forward.1} parent=0 // pred_check
    _
  $region19: #{mlp_forward.1} parent=0 // pred_check_branch
    %23 = sbr.rel (0) target = $region21
  $region20: #{mlp_forward.1} parent=0 // pred_region
    _
  $region21: #{mlp_forward.1} parent=0 // pred_fallthru
    _
  // Predicated region
  $region22: #{mlp_forward.1} parent=0 // pred_check
    _
  $region23: #{mlp_forward.1} parent=0 // pred_check_branch
    %25 = sbr.rel (0) target = $region25
  $region24: #{mlp_forward.1} parent=0 // pred_region
    _
  $region25: #{mlp_forward.1} parent=0 // pred_fallthru
    _
  // Predicated region
  $region26: #{mlp_forward.1} parent=0 // pred_check
    _
  $region27: #{mlp_forward.1} parent=0 // pred_check_branch
    %27 = sbr.rel (0) target = $region29
  $region28: #{mlp_forward.1} parent=0 // pred_region
    _
  $region29: #{mlp_forward.1} parent=0 // pred_fallthru
    _
  %v28 = vld [vmem:[%s1] sm:$0xff]
  %v29 = vld [vmem:[%s1 + $0x8] sm:$0xff]
  %v30 = vld [vmem:[%s1 + $0x10] sm:$0xff]
  %v31 = vld [vmem:[%s1 + $0x18] sm:$0xff]
  %v32 = vld [vmem:[%s1 + $0x20] sm:$0xff]
  %v33 = vld [vmem:[%s1 + $0x28] sm:$0xff]
  %v34 = vld [vmem:[%s1 + $0x30] sm:$0xff]
  %v35 = vld [vmem:[%s1 + $0x38] sm:$0xff]
  %v36 = vld [vmem:[%s2] sm:$0xff]
  %v37 = vld [vmem:[%s2 + $0x8] sm:$0xff]
  %v38 = vld [vmem:[%s2 + $0x10] sm:$0xff]
  %v39 = vld [vmem:[%s2 + $0x18] sm:$0xff]
  %v40 = vld [vmem:[%s2 + $0x20] sm:$0xff]
  %v41 = vld [vmem:[%s2 + $0x28] sm:$0xff]
  %v42 = vld [vmem:[%s2 + $0x30] sm:$0xff]
  %v43 = vld [vmem:[%s2 + $0x38] sm:$0xff]
  %v44 = vld [vmem:[%s3] sm:$0xff]
  %v45 = vld [vmem:[%s3 + $0x8] sm:$0xff]
  %v46 = vld [vmem:[%s3 + $0x10] sm:$0xff]
  %v47 = vld [vmem:[%s3 + $0x18] sm:$0xff]
  %v48 = vld [vmem:[%s4] sm:$0xff]
  %v49 = vld [vmem:[%s4 + $0x8] sm:$0xff]
  %v50 = vld [vmem:[%s4 + $0x10] sm:$0xff]
  %v51 = vld [vmem:[%s4 + $0x18] sm:$0xff]
  %v52 = vld [vmem:[%s5] sm:$0xff]
  %v53 = vld [vmem:[%s5 + $0x8] sm:$0xff]
  %v54 = vld [vmem:[%s5 + $0x10] sm:$0xff]
  %v55 = vld [vmem:[%s5 + $0x18] sm:$0xff]
  %v56 = vld [vmem:[#allocation2] sm:$0x1]
  %v57 = vld [vmem:[%s0] sm:$0xff]
  %v58 = vld [vmem:[%s0 + $0x8] sm:$0xff]
  %v59 = vld [vmem:[%s0 + $0x10] sm:$0xff]
  %v60 = vld [vmem:[%s0 + $0x18] sm:$0xff]
  %v61 = vld [vmem:[%s0 + $0x20] sm:$0xff]
  %v62 = vld [vmem:[%s0 + $0x28] sm:$0xff]
  %v63 = vld [vmem:[%s0 + $0x30] sm:$0xff]
  %v64 = vld [vmem:[%s0 + $0x38] sm:$0xff]
  %v65 = vld [vmem:[%s0 + $0x40] sm:$0xff]
  %v66 = vld [vmem:[%s0 + $0x48] sm:$0xff]
  %v67 = vld [vmem:[%s0 + $0x50] sm:$0xff]
  %v68 = vld [vmem:[%s0 + $0x58] sm:$0xff]
  %v69 = vld [vmem:[%s0 + $0x60] sm:$0xff]
  %v70 = vld [vmem:[%s0 + $0x68] sm:$0xff]
  %v71 = vld [vmem:[%s0 + $0x70] sm:$0xff]
  %v72 = vld [vmem:[%s0 + $0x78] sm:$0xff]
  %74 = vset.pattern.permute.xlu0 0
  %75 = vperm.xlu0 %74, %v36
  %v76 = vpop.permute.xlu0 %75
  %79 = vset.pattern.permute.xlu0 0
  %80 = vperm.xlu0 %79, %v37
  %v81 = vpop.permute.xlu0 %80
  %84 = vset.pattern.permute.xlu0 0
  %85 = vperm.xlu0 %84, %v38
  %v86 = vpop.permute.xlu0 %85
  %89 = vset.pattern.permute.xlu0 0
  %90 = vperm.xlu0 %89, %v39
  %v91 = vpop.permute.xlu0 %90
  %94 = vset.pattern.permute.xlu0 0
  %95 = vperm.xlu0 %94, %v40
  %v96 = vpop.permute.xlu0 %95
  %99 = vset.pattern.permute.xlu0 0
  %100 = vperm.xlu0 %99, %v41
  %v101 = vpop.permute.xlu0 %100
  %104 = vset.pattern.permute.xlu0 0
  %105 = vperm.xlu0 %104, %v42
  %v106 = vpop.permute.xlu0 %105
  %109 = vset.pattern.permute.xlu0 0
  %110 = vperm.xlu0 %109, %v43
  %v111 = vpop.permute.xlu0 %110
  %vm113 = vcmask 261120
  %v115 = vsel %vm113, %v28, 0
  %v118 = vsel %vm113, %v29, 0
  %v121 = vsel %vm113, %v30, 0
  %v124 = vsel %vm113, %v31, 0
  %v127 = vsel %vm113, %v32, 0
  %v130 = vsel %vm113, %v33, 0
  %v133 = vsel %vm113, %v34, 0
  %v136 = vsel %vm113, %v35, 0
  %v139 = vsel %vm113, %v57, 0
  %v142 = vsel %vm113, %v58, 0
  %v145 = vsel %vm113, %v59, 0
  %v148 = vsel %vm113, %v60, 0
  %v151 = vsel %vm113, %v61, 0
  %v154 = vsel %vm113, %v62, 0
  %v157 = vsel %vm113, %v63, 0
  %v160 = vsel %vm113, %v64, 0
  %v163 = vsel %vm113, %v65, 0
  %v166 = vsel %vm113, %v66, 0
  %v169 = vsel %vm113, %v67, 0
  %v172 = vsel %vm113, %v68, 0
  %v175 = vsel %vm113, %v69, 0
  %v178 = vsel %vm113, %v70, 0
  %v181 = vsel %vm113, %v71, 0
  %v184 = vsel %vm113, %v72, 0
  %186 = vmatpush.xpose.msra.mxu0 %v184
  %187 = vmatpush.xpose.msra.mxu0 %v181
  %188 = vmatpush.xpose.msra.mxu0 %v178
  %189 = vmatpush.xpose.msra.mxu0 %v175
  %190 = vmatpush.xpose.msra.mxu0 %v172
  %191 = vmatpush.xpose.msra.mxu0 %v169
  %192 = vmatpush.xpose.msra.mxu0 %v166
  %193 = vmatpush.xpose.msra.mxu0 %v163
  %194 = vmatpush.xpose.msra.mxu0 %v160
  %195 = vmatpush.xpose.msra.mxu0 %v157
  %196 = vmatpush.xpose.msra.mxu0 %v154
  %197 = vmatpush.xpose.msra.mxu0 %v151
  %198 = vmatpush.xpose.msra.mxu0 %v148
  %199 = vmatpush.xpose.msra.mxu0 %v145
  %200 = vmatpush.xpose.msra.mxu0 %v142
  %201 = vmatpush.xpose.msra.mxu0 %v139
  %202 = vmatmul.f32.gmra.mxu0 %v115
  %v203 = vpop.f32.mrf.mxu0
  %v204 = vadd.f32 %v76, %v203
  %205 = vmatmul.f32.gmra.mxu0 %v118
  %v206 = vpop.f32.mrf.mxu0
  %v207 = vadd.f32 %v81, %v206
  %208 = vmatmul.f32.gmra.mxu0 %v121
  %v209 = vpop.f32.mrf.mxu0
  %v210 = vadd.f32 %v86, %v209
  %211 = vmatmul.f32.gmra.mxu0 %v124
  %v212 = vpop.f32.mrf.mxu0
  %v213 = vadd.f32 %v91, %v212
  %214 = vmatmul.f32.gmra.mxu0 %v127
  %v215 = vpop.f32.mrf.mxu0
  %v216 = vadd.f32 %v96, %v215
  %217 = vmatmul.f32.gmra.mxu0 %v130
  %v218 = vpop.f32.mrf.mxu0
  %v219 = vadd.f32 %v101, %v218
  %220 = vmatmul.f32.gmra.mxu0 %v133
  %v221 = vpop.f32.mrf.mxu0
  %v222 = vadd.f32 %v106, %v221
  %223 = vmatmul.f32.gmra.mxu0 %v136
  %v224 = vpop.f32.mrf.mxu0
  %v225 = vadd.f32 %v111, %v224
  %226 = vdwg.mxu0
  %v227 = vmax.f32 %v204, 0.0
  %v228 = vmax.f32 %v207, 0.0
  %v229 = vmax.f32 %v210, 0.0
  %v230 = vmax.f32 %v213, 0.0
  %v231 = vmax.f32 %v216, 0.0
  %v232 = vmax.f32 %v219, 0.0
  %v233 = vmax.f32 %v222, 0.0
  %v234 = vmax.f32 %v225, 0.0
  %236 = vset.pattern.permute.xlu0 0
  %237 = vperm.xlu0 %236, %v48
  %v238 = vpop.permute.xlu0 %237
  %241 = vset.pattern.permute.xlu0 0
  %242 = vperm.xlu0 %241, %v49
  %v243 = vpop.permute.xlu0 %242
  %246 = vset.pattern.permute.xlu0 0
  %247 = vperm.xlu0 %246, %v50
  %v248 = vpop.permute.xlu0 %247
  %251 = vset.pattern.permute.xlu0 0
  %252 = vperm.xlu0 %251, %v51
  %v253 = vpop.permute.xlu0 %252
  %vm255 = vcmask 523264
  %v257 = vsel %vm255, %v44, 0
  %v260 = vsel %vm255, %v45, 0
  %v263 = vsel %vm255, %v46, 0
  %v266 = vsel %vm255, %v47, 0
  %268 = vmatpush.msra.mxu0 0.0
  %269 = vmatpush.msra.mxu0 0.0
  %270 = vmatpush.msra.mxu0 0.0
  %271 = vmatpush.msra.mxu0 0.0
  %272 = vmatpush.msra.mxu0 0.0
  %273 = vmatpush.msra.mxu0 0.0
  %274 = vmatpush.msra.mxu0 0.0
  %275 = vmatpush.msra.mxu0 0.0
  %276 = vmatpush.msra.mxu0 %v234
  %277 = vmatpush.msra.mxu0 %v233
  %278 = vmatpush.msra.mxu0 %v232
  %279 = vmatpush.msra.mxu0 %v231
  %280 = vmatpush.msra.mxu0 %v230
  %281 = vmatpush.msra.mxu0 %v229
  %282 = vmatpush.msra.mxu0 %v228
  %283 = vmatpush.msra.mxu0 %v227
  %284 = vmatmul.f32.gmra.mxu0 %v257
  %v285 = vpop.f32.mrf.mxu0
  %v286 = vadd.f32 %v238, %v285
  %287 = vmatmul.f32.gmra.mxu0 %v260
  %v288 = vpop.f32.mrf.mxu0
  %v289 = vadd.f32 %v243, %v288
  %290 = vmatmul.f32.gmra.mxu0 %v263
  %v291 = vpop.f32.mrf.mxu0
  %v292 = vadd.f32 %v248, %v291
  %293 = vmatmul.f32.gmra.mxu0 %v266
  %v294 = vpop.f32.mrf.mxu0
  %v295 = vadd.f32 %v253, %v294
  %296 = vdwg.mxu0
  %v297 = vmax.f32 %v286, 0.0
  %v298 = vmax.f32 %v289, 0.0
  %v299 = vmax.f32 %v292, 0.0
  %v300 = vmax.f32 %v295, 0.0
  %302 = vset.pattern.permute.xlu0 0
  %303 = vperm.xlu0 %302, %v52
  %v304 = vpop.permute.xlu0 %303
  %307 = vset.pattern.permute.xlu0 0
  %308 = vperm.xlu0 %307, %v53
  %v309 = vpop.permute.xlu0 %308
  %312 = vset.pattern.permute.xlu0 0
  %313 = vperm.xlu0 %312, %v54
  %v314 = vpop.permute.xlu0 %313
  %317 = vset.pattern.permute.xlu0 0
  %318 = vperm.xlu0 %317, %v55
  %v319 = vpop.permute.xlu0 %318
  %v321 = vmul.f32 %v297, %v304
  %v322 = vmul.f32 %v298, %v309
  %v323 = vmul.f32 %v299, %v314
  %v324 = vmul.f32 %v300, %v319
  %v325 = vadd.f32 %v321, %v322
  %v326 = vadd.f32 %v325, %v323
  %v327 = vadd.f32 %v326, %v324
  %v328 = vrot.slane %v327, 4
  %v329 = vadd.f32 %v327, %v328
  %v330 = vrot.slane %v329, 2
  %v331 = vadd.f32 %v329, %v330
  %v332 = vrot.slane %v331, 1
  %v333 = vadd.f32 %v331, %v332
  %335 = vset.pattern.permute.xlu0 0
  %336 = vperm.xlu0 %335, %v56
  %v337 = vpop.permute.xlu0 %336
  %v339 = vperm.slane %v337, 0
  %v340 = vadd.f32 %v333, %v339
  %341 = vst [vmem:[%s7] sm:$0x1] %v340
  // Predicated region
  $region30: #{mlp_forward.1} parent=0 // pred_check
    _
  $region31: #{mlp_forward.1} parent=0 // pred_check_branch
    %343 = sbr.rel (0) target = $region33
  $region32: #{mlp_forward.1} parent=0 // pred_region
    _
  $region33: #{mlp_forward.1} parent=0 // pred_fallthru
    _
  // Predicated region
  $region34: #{mlp_forward.1} parent=0 // pred_check
    _
  $region35: #{mlp_forward.1} parent=0 // pred_check_branch
    %345 = sbr.rel (0) target = $region37
  $region36: #{mlp_forward.1} parent=0 // pred_region
    _
  $region37: #{mlp_forward.1} parent=0 // pred_fallthru
    _

</llo_original>
